<compile_context>
chip_gen: v7x
topology: tpu7x:2x2x1
jax: 0.10.0
libtpu: 0.0.40
codegen_flags: <defaults>
</compile_context>

<pallas_src>
import jax
import jax.numpy as jnp
from jax.experimental import pallas as pl
from jax.experimental.pallas import tpu as pltpu


def _round_up(x: int, m: int) -> int:
    return ((x + m - 1) // m) * m


def _make_nas_kernel(num_hidden: int, compute_dtype):
    """Kernel ref order:
       inputs : x [TB, 2E] compute_dtype,
                (w_l [in,out] compute_dtype, b_l [1,out] f32) * num_hidden,
                w_out_row [1, last] f32
       output : inf [1, 1, TB] f32   (lane-dense row per batch tile)
    """

    def kernel(*refs):
        x_ref = refs[0]
        out_ref = refs[-1]
        x = x_ref[...]                                    # [TB, 2E]

        if num_hidden > 0:
            h = x
            for l in range(num_hidden):
                w = refs[1 + 2 * l][...]                  # [in, out] compute_dtype
                b = refs[2 + 2 * l][...]                  # [1, out]  f32
                if l > 0:
                    h = h.astype(compute_dtype)
                h = jnp.dot(h, w, preferred_element_type=jnp.float32) + b
                h = jnp.maximum(h, 0.0)
            acts = h                                      # [TB, last] f32
            wout = refs[1 + 2 * num_hidden][...]          # [1, last]  f32
        else:
            acts = x.astype(jnp.float32)                  # [TB, 2E]   f32
            wout = refs[1][...]                           # [1, 2E]    f32

        # Final N=1 projection produced directly as a lane-dense [1, TB] row:
        # (1, last) . (TB, last) contracted over 'last'.
        inf_row = jax.lax.dot_general(
            wout, acts, (((1,), (1,)), ((), ())),
            preferred_element_type=jnp.float32)           # [1, TB]
        out_ref[0] = inf_row

    return kernel


def nas_forward(users, items, params, reg, *, batch_tile=1024,
                compute_dtype=jnp.bfloat16):
    """Pallas-backed NAS.forward.

    users, items: int32 [B] index arrays.
    params: dict with 'user_emb' [U,E], 'item_emb' [I,E],
            'hidden' list of (W [in,out], b [out]), 'w_out' [last,1].
    Returns (inferences [B,1] float32, regs scalar float32).
    """
    # Glue: embedding gather in plain JAX.
    ue = params["user_emb"][users]                     # [B, E] f32
    ie = params["item_emb"][items]                     # [B, E] f32

    # Regularizer in the wrapper, from the f32 embeddings (exact, and keeps the
    # kernel's batch axis fully parallel for v7x megacore).
    regs = jnp.float32(reg) * (jnp.linalg.norm(ue) + jnp.linalg.norm(ie))

    # Pack user+item embeddings into one unpadded [B, 2E] bf16 array.
    x = jnp.concatenate([ue, ie], axis=-1).astype(compute_dtype)
    B, twoE = x.shape

    # Batch tiling only (no lane padding): TB multiple of 8.
    B8 = _round_up(B, 8)
    TB = min(_round_up(int(batch_tile), 8), B8)
    B_pad = _round_up(B8, TB)
    n_tiles = B_pad // TB
    if B_pad != B:
        x = jnp.pad(x, ((0, B_pad - B), (0, 0)))       # zero tail rows (sliced away)

    def _resident(shape):
        # Whole array as one block, constant index -> fetched once, VMEM-resident.
        return pl.BlockSpec(shape, lambda i: tuple(0 for _ in shape))

    kernel_inputs = [x]
    in_specs = [pl.BlockSpec((TB, twoE), lambda i: (i, 0))]

    hidden = params["hidden"]
    num_hidden = len(hidden)
    for (w, b) in hidden:
        wq = w.astype(compute_dtype)                    # [in, out]
        bq = b.astype(jnp.float32).reshape(1, -1)       # [1, out]
        kernel_inputs += [wq, bq]
        in_specs += [_resident(wq.shape), _resident(bq.shape)]

    wout_row = params["w_out"][:, 0].astype(jnp.float32).reshape(1, -1)
    kernel_inputs.append(wout_row)
    in_specs.append(_resident(wout_row.shape))

    kernel = _make_nas_kernel(num_hidden, compute_dtype)

    out = pl.pallas_call(
        kernel,
        out_shape=jax.ShapeDtypeStruct((n_tiles, 1, TB), jnp.float32),
        grid=(n_tiles,),
        in_specs=in_specs,
        out_specs=pl.BlockSpec((1, 1, TB), lambda i: (i, 0, 0)),
        compiler_params=pltpu.CompilerParams(
            dimension_semantics=("parallel",),
        ),
    )(*kernel_inputs)

    inferences = out.reshape(-1)[:B][:, None]           # [B, 1] f32
    return inferences, regs


def init_params(key, num_users, num_items, embedding_dim, arch):
    """Deterministic parameter init matching the module's shapes (float32)."""
    n_keys = 3 + 2 * len(arch) + 1
    keys = jax.random.split(key, n_keys)
    k_idx = 0

    def nk():
        nonlocal k_idx
        k = keys[k_idx]
        k_idx += 1
        return k

    params = {}
    params["user_emb"] = jax.random.normal(nk(), (num_users, embedding_dim),
                                           jnp.float32)
    params["item_emb"] = jax.random.normal(nk(), (num_items, embedding_dim),
                                           jnp.float32)

    hidden = []
    in_dim = 2 * embedding_dim
    for out_dim in arch:
        bound = 1.0 / float(jnp.sqrt(in_dim))
        w = jax.random.uniform(nk(), (in_dim, out_dim), jnp.float32,
                               -bound, bound)
        b = jax.random.uniform(nk(), (out_dim,), jnp.float32, -bound, bound)
        hidden.append((w, b))
        in_dim = out_dim
    params["hidden"] = hidden

    last = arch[-1] if len(arch) > 0 else 2 * embedding_dim
    bound = 1.0 / float(jnp.sqrt(last))
    params["w_out"] = jax.random.uniform(nk(), (last, 1), jnp.float32,
                                         -bound, bound)
    return params


def reference_forward(users, items, params, reg):
    """Pure-JAX f32 reference for correctness check."""
    ue = params["user_emb"][users]
    ie = params["item_emb"][items]
    h = jnp.concatenate([ue, ie], axis=-1)
    for (w, b) in params["hidden"]:
        h = jnp.maximum(h @ w + b, 0.0)
    inferences = h @ params["w_out"]
    regs = reg * (jnp.linalg.norm(ue) + jnp.linalg.norm(ie))
    return inferences, regs


if __name__ == "__main__":
    num_users = 10
    num_items = 12
    embedding_dim = 32
    reg = 0.01

    key = jax.random.PRNGKey(0)
    kp, ku, ki = jax.random.split(key, 3)

    # --- Test 1: MLP arch, small batch (single grid step) -------------------
    arch = (64, 32)
    params = init_params(kp, num_users, num_items, embedding_dim, arch)

    batch = 8
    users = jax.random.randint(ku, (batch,), 0, num_users, dtype=jnp.int32)
    items = jax.random.randint(ki, (batch,), 0, num_items, dtype=jnp.int32)

    inferences, regs = nas_forward(users, items, params, reg)
    inferences = jax.block_until_ready(inferences)
    regs = jax.block_until_ready(regs)

    ref_inf, ref_regs = reference_forward(users, items, params, reg)
    assert inferences.shape == (batch, 1)
    assert jnp.allclose(inferences, ref_inf, atol=5e-2, rtol=5e-2), (
        float(jnp.max(jnp.abs(inferences - ref_inf))))
    assert jnp.allclose(regs, ref_regs, atol=1e-5, rtol=1e-5), (
        float(regs), float(ref_regs))

    # --- Test 2: larger, non-tile-aligned batch -> multi-step parallel grid --
    batch2 = 300
    ku2, ki2 = jax.random.split(jax.random.PRNGKey(1), 2)
    users2 = jax.random.randint(ku2, (batch2,), 0, num_users, dtype=jnp.int32)
    items2 = jax.random.randint(ki2, (batch2,), 0, num_items, dtype=jnp.int32)

    inf2, regs2 = nas_forward(users2, items2, params, reg, batch_tile=128)
    inf2 = jax.block_until_ready(inf2)
    regs2 = jax.block_until_ready(regs2)

    ref_inf2, ref_regs2 = reference_forward(users2, items2, params, reg)
    assert inf2.shape == (batch2, 1)
    assert jnp.allclose(inf2, ref_inf2, atol=5e-2, rtol=5e-2), (
        float(jnp.max(jnp.abs(inf2 - ref_inf2))))
    assert jnp.allclose(regs2, ref_regs2, atol=1e-5, rtol=1e-5), (
        float(regs2), float(ref_regs2))

    # --- Test 3: empty arch -> single Linear(2E -> 1, bias=False) path -------
    arch0 = ()
    params0 = init_params(jax.random.PRNGKey(2), num_users, num_items,
                          embedding_dim, arch0)
    batch3 = 37
    ku3, ki3 = jax.random.split(jax.random.PRNGKey(3), 2)
    users3 = jax.random.randint(ku3, (batch3,), 0, num_users, dtype=jnp.int32)
    items3 = jax.random.randint(ki3, (batch3,), 0, num_items, dtype=jnp.int32)

    inf3, regs3 = nas_forward(users3, items3, params0, reg)
    inf3 = jax.block_until_ready(inf3)
    regs3 = jax.block_until_ready(regs3)

    ref_inf3, ref_regs3 = reference_forward(users3, items3, params0, reg)
    assert inf3.shape == (batch3, 1)
    assert jnp.allclose(inf3, ref_inf3, atol=5e-2, rtol=5e-2), (
        float(jnp.max(jnp.abs(inf3 - ref_inf3))))
    assert jnp.allclose(regs3, ref_regs3, atol=1e-5, rtol=1e-5), (
        float(regs3), float(ref_regs3))

    print("KERNEL_OK")
</pallas_src>

<mosaic_0001>
module attributes {stable_mosaic.version = 11 : i64} {
  func.func @kernel(%arg0: i32, %arg1: memref<8x64xbf16, #tpu.memory_space<vmem>>, %arg2: memref<64x64xbf16, #tpu.memory_space<vmem>>, %arg3: memref<1x64xf32, #tpu.memory_space<vmem>>, %arg4: memref<64x32xbf16, #tpu.memory_space<vmem>>, %arg5: memref<1x32xf32, #tpu.memory_space<vmem>>, %arg6: memref<1x32xf32, #tpu.memory_space<vmem>>, %arg7: memref<1x1x8xf32, #tpu.memory_space<vmem>>) attributes {dimension_semantics = [#tpu.dimension_semantics<parallel>], iteration_bounds = array<i64: 1>, scalar_prefetch = 0 : i64, scratch_operands = 0 : i64, tpu.core_type = #tpu.core_type<tc>, window_params = [{transform_indices = @transform_0, window_bounds = array<i64: 8, 64>}, {pipeline_mode = #tpu.pipeline_mode<synchronous>, transform_indices = @transform_1, window_bounds = array<i64: 64, 64>}, {pipeline_mode = #tpu.pipeline_mode<synchronous>, transform_indices = @transform_2, window_bounds = array<i64: 1, 64>}, {pipeline_mode = #tpu.pipeline_mode<synchronous>, transform_indices = @transform_3, window_bounds = array<i64: 64, 32>}, {pipeline_mode = #tpu.pipeline_mode<synchronous>, transform_indices = @transform_4, window_bounds = array<i64: 1, 32>}, {pipeline_mode = #tpu.pipeline_mode<synchronous>, transform_indices = @transform_5, window_bounds = array<i64: 1, 32>}, {transform_indices = @transform_6, window_bounds = array<i64: 1, 1, 8>}]} {
    %c0 = arith.constant 0 : index
    %c0_0 = arith.constant 0 : index
    %0 = vector.load %arg1[%c0, %c0_0] : memref<8x64xbf16, #tpu.memory_space<vmem>>, vector<8x64xbf16>
    %c0_1 = arith.constant 0 : index
    %c0_2 = arith.constant 0 : index
    %1 = vector.load %arg2[%c0_1, %c0_2] : memref<64x64xbf16, #tpu.memory_space<vmem>>, vector<64x64xbf16>
    %c0_3 = arith.constant 0 : index
    %c0_4 = arith.constant 0 : index
    %2 = vector.load %arg3[%c0_3, %c0_4] : memref<1x64xf32, #tpu.memory_space<vmem>>, vector<1x64xf32>
    %cst = arith.constant dense<0.000000e+00> : vector<8x64xf32>
    %3 = tpu.matmul %0, %1, %cst {dimension_numbers = #tpu.dot_dimension_numbers<[1], [0], [0], [1], [0, 0, 1, 1], [], []>} : vector<8x64xbf16>, vector<64x64xbf16>, vector<8x64xf32> -> vector<8x64xf32>
    %4 = vector.broadcast %2 : vector<1x64xf32> to vector<8x64xf32>
    %5 = arith.addf %3, %4 : vector<8x64xf32>
    %cst_5 = arith.constant 0.000000e+00 : f32
    %6 = vector.broadcast %cst_5 : f32 to vector<8x64xf32>
    %7 = arith.maximumf %5, %6 : vector<8x64xf32>
    %c0_6 = arith.constant 0 : index
    %c0_7 = arith.constant 0 : index
    %8 = vector.load %arg4[%c0_6, %c0_7] : memref<64x32xbf16, #tpu.memory_space<vmem>>, vector<64x32xbf16>
    %c0_8 = arith.constant 0 : index
    %c0_9 = arith.constant 0 : index
    %9 = vector.load %arg5[%c0_8, %c0_9] : memref<1x32xf32, #tpu.memory_space<vmem>>, vector<1x32xf32>
    %10 = arith.truncf %7 : vector<8x64xf32> to vector<8x64xbf16>
    %cst_10 = arith.constant dense<0.000000e+00> : vector<8x32xf32>
    %11 = tpu.matmul %10, %8, %cst_10 {dimension_numbers = #tpu.dot_dimension_numbers<[1], [0], [0], [1], [0, 0, 1, 1], [], []>} : vector<8x64xbf16>, vector<64x32xbf16>, vector<8x32xf32> -> vector<8x32xf32>
    %12 = vector.broadcast %9 : vector<1x32xf32> to vector<8x32xf32>
    %13 = arith.addf %11, %12 : vector<8x32xf32>
    %cst_11 = arith.constant 0.000000e+00 : f32
    %14 = vector.broadcast %cst_11 : f32 to vector<8x32xf32>
    %15 = arith.maximumf %13, %14 : vector<8x32xf32>
    %c0_12 = arith.constant 0 : index
    %c0_13 = arith.constant 0 : index
    %16 = vector.load %arg6[%c0_12, %c0_13] : memref<1x32xf32, #tpu.memory_space<vmem>>, vector<1x32xf32>
    %cst_14 = arith.constant dense<0.000000e+00> : vector<1x8xf32>
    %17 = tpu.matmul %16, %15, %cst_14 {dimension_numbers = #tpu.dot_dimension_numbers<[1], [1], [0], [0], [0, 0, 1, 0], [], []>} : vector<1x32xf32>, vector<8x32xf32>, vector<1x8xf32> -> vector<1x8xf32>
    %c0_15 = arith.constant 0 : index
    %c0_16 = arith.constant 0 : index
    %c0_17 = arith.constant 0 : index
    %18 = vector.load %arg7[%c0_15, %c0_16, %c0_17] : memref<1x1x8xf32, #tpu.memory_space<vmem>>, vector<1x1x8xf32>
    %19 = vector.shape_cast %18 : vector<1x1x8xf32> to vector<1x8xf32>
    %20 = vector.shape_cast %17 : vector<1x8xf32> to vector<1x1x8xf32>
    tpu.vector_store %arg7[%c0_15, %c0_16, %c0_17], %20 {strides = array<i32>} : memref<1x1x8xf32, #tpu.memory_space<vmem>>, vector<1x1x8xf32>,
    return
  }
  func.func @transform_0(%arg0: i32) -> (i32, i32) {
    %c0_i32 = arith.constant 0 : i32
    %c0_i32_0 = arith.constant 0 : i32
    return %arg0, %c0_i32 : i32, i32
  }
  func.func @transform_1(%arg0: i32) -> (i32, i32) {
    %c0_i32 = arith.constant 0 : i32
    %c0_i32_0 = arith.constant 0 : i32
    %c0_i32_1 = arith.constant 0 : i32
    return %c0_i32, %c0_i32_0 : i32, i32
  }
  func.func @transform_2(%arg0: i32) -> (i32, i32) {
    %c0_i32 = arith.constant 0 : i32
    %c0_i32_0 = arith.constant 0 : i32
    %c0_i32_1 = arith.constant 0 : i32
    return %c0_i32, %c0_i32_0 : i32, i32
  }
  func.func @transform_3(%arg0: i32) -> (i32, i32) {
    %c0_i32 = arith.constant 0 : i32
    %c0_i32_0 = arith.constant 0 : i32
    %c0_i32_1 = arith.constant 0 : i32
    return %c0_i32, %c0_i32_0 : i32, i32
  }
  func.func @transform_4(%arg0: i32) -> (i32, i32) {
    %c0_i32 = arith.constant 0 : i32
    %c0_i32_0 = arith.constant 0 : i32
    %c0_i32_1 = arith.constant 0 : i32
    return %c0_i32, %c0_i32_0 : i32, i32
  }
  func.func @transform_5(%arg0: i32) -> (i32, i32) {
    %c0_i32 = arith.constant 0 : i32
    %c0_i32_0 = arith.constant 0 : i32
    %c0_i32_1 = arith.constant 0 : i32
    return %c0_i32, %c0_i32_0 : i32, i32
  }
  func.func @transform_6(%arg0: i32) -> (i32, i32, i32) {
    %c0_i32 = arith.constant 0 : i32
    %c0_i32_0 = arith.constant 0 : i32
    %c0_i32_1 = arith.constant 0 : i32
    return %arg0, %c0_i32, %c0_i32_0 : i32, i32, i32
  }
}

</mosaic_0001>

<llo_original>
// kernel: tpu_custom_call.1
$region0: #{tpu_custom_call.1}
  #allocation0 [shape = 'u32[]', space=smem, size = 0x4, offset = 0x4, fixed_abs, tag = 'smem constant byte address 0x4 - core index']
  #allocation1 [shape = 'u32[144,128]{1,0:T(1,128)}', space=vmem, size = 0x12000, scoped, tag = 'internal scratch']
  %s0 = inlined_call_operand.vmem [shape: bf16[8,64], index: 0, kind: input, shape index: {}]
  %s1 = inlined_call_operand.vmem [shape: bf16[64,64], index: 1, kind: input, shape index: {}]
  %s2 = inlined_call_operand.vmem [shape: f32[1,64], index: 2, kind: input, shape index: {}]
  %s3 = inlined_call_operand.vmem [shape: bf16[64,32], index: 3, kind: input, shape index: {}]
  %s4 = inlined_call_operand.vmem [shape: f32[1,32], index: 4, kind: input, shape index: {}]
  %s5 = inlined_call_operand.vmem [shape: f32[1,32], index: 5, kind: input, shape index: {}]
  %s6 = inlined_call_operand.hbm [shape: f32[1,1,8], index: 6, kind: output, shape index: {}]
  %s7 = sld [smem:[#allocation0]]
  $region34: #{tpu_custom_call.1} parent=0
    _
  %s9 = ssub.s32 1, %s7
  %s10 = scalar_select 0, %s9, %s7
  $region1: #{tpu_custom_call.1} parent=0
    #allocation2 [shape = 'u8[512]{0}', space=vmem, size = 0x400, scoped, tag = 'output window, operand 0, single buffered']
    #allocation3 [shape = 's32[1]{0}', space=sflag, size = 0x4, scoped, tag = 'scoped memory for tpu_custom_call.1']
    %11 = vsyncpa [#allocation3], 0
    // Predicated region
    $region2: #{tpu_custom_call.1} parent=1 // pred_check
      _
    $region3: #{tpu_custom_call.1} parent=1 // pred_check_branch
      %13 = sbr.rel (0) target = $region5
    $region4: #{tpu_custom_call.1} parent=1 // pred_region
      _
    $region5: #{tpu_custom_call.1} parent=1 // pred_fallthru
      _
    // Predicated region
    $region6: #{tpu_custom_call.1} parent=1 // pred_check
      _
    $region7: #{tpu_custom_call.1} parent=1 // pred_check_branch
      %15 = sbr.rel (0) target = $region9
    $region8: #{tpu_custom_call.1} parent=1 // pred_region
      _
    $region9: #{tpu_custom_call.1} parent=1 // pred_fallthru
      _
    // Predicated region
    $region10: #{tpu_custom_call.1} parent=1 // pred_check
      _
    $region11: #{tpu_custom_call.1} parent=1 // pred_check_branch
      %17 = sbr.rel (0) target = $region13
    $region12: #{tpu_custom_call.1} parent=1 // pred_region
      _
    $region13: #{tpu_custom_call.1} parent=1 // pred_fallthru
      _
    // Predicated region
    $region14: #{tpu_custom_call.1} parent=1 // pred_check
      _
    $region15: #{tpu_custom_call.1} parent=1 // pred_check_branch
      %19 = sbr.rel (0) target = $region17
    $region16: #{tpu_custom_call.1} parent=1 // pred_region
      _
    $region17: #{tpu_custom_call.1} parent=1 // pred_fallthru
      _
    // Predicated region
    $region18: #{tpu_custom_call.1} parent=1 // pred_check
      _
    $region19: #{tpu_custom_call.1} parent=1 // pred_check_branch
      %21 = sbr.rel (0) target = $region21
    $region20: #{tpu_custom_call.1} parent=1 // pred_region
      _
    $region21: #{tpu_custom_call.1} parent=1 // pred_fallthru
      _
    // Predicated region
    $region22: #{tpu_custom_call.1} parent=1 // pred_check
      _
    $region23: #{tpu_custom_call.1} parent=1 // pred_check_branch
      %23 = sbr.rel (0) target = $region25
    $region24: #{tpu_custom_call.1} parent=1 // pred_region
      _
    $region25: #{tpu_custom_call.1} parent=1 // pred_fallthru
      _
    %v25 = vld [vmem:[%s0] sm:$0xf]
    %v26 = vld [vmem:[%s1] sm:$0xf]
    %v27 = vld [vmem:[%s1 + $0x4] sm:$0xf]
    %v28 = vld [vmem:[%s1 + $0x8] sm:$0xf]
    %v29 = vld [vmem:[%s1 + $0xc] sm:$0xf]
    %v30 = vld [vmem:[%s1 + $0x10] sm:$0xf]
    %v31 = vld [vmem:[%s1 + $0x14] sm:$0xf]
    %v32 = vld [vmem:[%s1 + $0x18] sm:$0xf]
    %v33 = vld [vmem:[%s1 + $0x1c] sm:$0xf]
    %v34 = vld [vmem:[%s2] sm:$0x1]
    %v36 = vlaneseq
    %v37 = vshrl.u32 %v36, 7
    %v38 = vsub.s32 0, %v37
    %v39 = vrot.slane %v34, %v38
    %v49 = vunpack.c.l.b16 %v26
    %v50 = vunpack.c.l.b16 %v27
    %v51 = vunpack.c.l.b16 %v28
    %v52 = vunpack.c.l.b16 %v29
    %v53 = vunpack.c.l.b16 %v30
    %v54 = vunpack.c.l.b16 %v31
    %v55 = vunpack.c.l.b16 %v32
    %v56 = vunpack.c.l.b16 %v33
    %v57 = vpack.c.b16 %v50, %v49
    %v58 = vpack.c.b16 %v52, %v51
    %v59 = vpack.c.b16 %v54, %v53
    %v60 = vpack.c.b16 %v56, %v55
    %vm65 = vcmask 523264
    %v67 = vsel %vm65, %v25, 0
    %69 = vmatprep.subr.bf16.mxu0 0
    %70 = vmatpush1.bf16.msra.mxu0 %v57
    %71 = vmatprep.subr.bf16.mxu0 0
    %72 = vmatpush1.bf16.msra.mxu0 %v58
    %73 = vmatprep.subr.bf16.mxu0 0
    %74 = vmatpush1.bf16.msra.mxu0 %v59
    %75 = vmatprep.subr.bf16.mxu0 0
    %76 = vmatpush1.bf16.msra.mxu0 %v60
    %77 = vmatprep.subr.bf16.mxu0 0
    %78 = vmatpush1.bf16.msra.mxu0 0
    %79 = vmatprep.subr.bf16.mxu0 0
    %80 = vmatpush1.bf16.msra.mxu0 0
    %81 = vmatprep.subr.bf16.mxu0 0
    %82 = vmatpush1.bf16.msra.mxu0 0
    %83 = vmatprep.subr.bf16.mxu0 0
    %84 = vmatpush1.bf16.msra.mxu0 0
    %85 = vmatprep.subr.bf16.mxu0 0
    %86 = vmatpush1.bf16.msra.mxu0 0
    %87 = vmatprep.subr.bf16.mxu0 0
    %88 = vmatpush1.bf16.msra.mxu0 0
    %89 = vmatprep.subr.bf16.mxu0 0
    %90 = vmatpush1.bf16.msra.mxu0 0
    %91 = vmatprep.subr.bf16.mxu0 0
    %92 = vmatpush1.bf16.msra.mxu0 0
    %93 = vmatprep.subr.bf16.mxu0 0
    %94 = vmatpush1.bf16.msra.mxu0 0
    %95 = vmatprep.subr.bf16.mxu0 0
    %96 = vmatpush1.bf16.msra.mxu0 0
    %97 = vmatprep.subr.bf16.mxu0 0
    %98 = vmatpush1.bf16.msra.mxu0 0
    %99 = vmatprep.subr.bf16.mxu0 0
    %100 = vmatpush1.bf16.msra.mxu0 0
    %101 = vmatprep.mubr.bf16.mxu0 0
    %102 = vmatmul.mubr.bf16.gmra.mrb[0].mxu0 %v67
    %v103 = vpop.f32.mrb[0].mxu0
    %v104 = vadd.f32 %v39, %v103
    %v105 = vpop.f32.mrb[0].mxu0
    %v106 = vpop.f32.mrb[0].mxu0
    %v107 = vpop.f32.mrb[0].mxu0
    %108 = vdwg.mxu0
    %v109 = vmax.f32 %v104, 0.0
    %v110 = vld [vmem:[%s3] sm:$0xf]
    %v111 = vld [vmem:[%s3 + $0x4] sm:$0xf]
    %v112 = vld [vmem:[%s3 + $0x8] sm:$0xf]
    %v113 = vld [vmem:[%s3 + $0xc] sm:$0xf]
    %v114 = vld [vmem:[%s3 + $0x10] sm:$0xf]
    %v115 = vld [vmem:[%s3 + $0x14] sm:$0xf]
    %v116 = vld [vmem:[%s3 + $0x18] sm:$0xf]
    %v117 = vld [vmem:[%s3 + $0x1c] sm:$0xf]
    %v118 = vld [vmem:[%s4] sm:$0x1]
    %v119 = vpack.c.bf16 %v109, %v109
    %v121 = vlaneseq
    %v122 = vshrl.u32 %v121, 7
    %v123 = vsub.s32 0, %v122
    %v124 = vrot.slane %v118, %v123
    %v134 = vunpack.c.l.b16 %v110
    %v135 = vunpack.c.l.b16 %v111
    %v136 = vunpack.c.l.b16 %v112
    %v137 = vunpack.c.l.b16 %v113
    %v138 = vunpack.c.l.b16 %v114
    %v139 = vunpack.c.l.b16 %v115
    %v140 = vunpack.c.l.b16 %v116
    %v141 = vunpack.c.l.b16 %v117
    %v142 = vpack.c.b16 %v135, %v134
    %v143 = vpack.c.b16 %v137, %v136
    %v144 = vpack.c.b16 %v139, %v138
    %v145 = vpack.c.b16 %v141, %v140
    %v151 = vsel %vm65, %v119, 0
    %153 = vmatprep.subr.bf16.mxu0 0
    %154 = vmatpush1.bf16.msra.mxu0 %v142
    %155 = vmatprep.subr.bf16.mxu0 0
    %156 = vmatpush1.bf16.msra.mxu0 %v143
    %157 = vmatprep.subr.bf16.mxu0 0
    %158 = vmatpush1.bf16.msra.mxu0 %v144
    %159 = vmatprep.subr.bf16.mxu0 0
    %160 = vmatpush1.bf16.msra.mxu0 %v145
    %161 = vmatprep.subr.bf16.mxu0 0
    %162 = vmatpush1.bf16.msra.mxu0 0
    %163 = vmatprep.subr.bf16.mxu0 0
    %164 = vmatpush1.bf16.msra.mxu0 0
    %165 = vmatprep.subr.bf16.mxu0 0
    %166 = vmatpush1.bf16.msra.mxu0 0
    %167 = vmatprep.subr.bf16.mxu0 0
    %168 = vmatpush1.bf16.msra.mxu0 0
    %169 = vmatprep.subr.bf16.mxu0 0
    %170 = vmatpush1.bf16.msra.mxu0 0
    %171 = vmatprep.subr.bf16.mxu0 0
    %172 = vmatpush1.bf16.msra.mxu0 0
    %173 = vmatprep.subr.bf16.mxu0 0
    %174 = vmatpush1.bf16.msra.mxu0 0
    %175 = vmatprep.subr.bf16.mxu0 0
    %176 = vmatpush1.bf16.msra.mxu0 0
    %177 = vmatprep.subr.bf16.mxu0 0
    %178 = vmatpush1.bf16.msra.mxu0 0
    %179 = vmatprep.subr.bf16.mxu0 0
    %180 = vmatpush1.bf16.msra.mxu0 0
    %181 = vmatprep.subr.bf16.mxu0 0
    %182 = vmatpush1.bf16.msra.mxu0 0
    %183 = vmatprep.subr.bf16.mxu0 0
    %184 = vmatpush1.bf16.msra.mxu0 0
    %185 = vmatprep.mubr.bf16.mxu0 0
    %186 = vmatmul.mubr.bf16.gmra.mrb[0].mxu0 %v151
    %v187 = vpop.f32.mrb[0].mxu0
    %v188 = vadd.f32 %v124, %v187
    %v189 = vpop.f32.mrb[0].mxu0
    %v190 = vpop.f32.mrb[0].mxu0
    %v191 = vpop.f32.mrb[0].mxu0
    %192 = vdwg.mxu0
    %v193 = vmax.f32 %v188, 0.0
    %v194 = vld [vmem:[%s5] sm:$0x1]
    %vm195 = vcmask 261120
    %v197 = vsel %vm195, %v194, 0
    %v200 = vsel %vm195, %v193, 0
    %202 = vmatprep.subr.mxu0 0.0
    %203 = vmatpush1.xpose.msra.mxu0 %v200
    %204 = vmatprep.subr.mxu0 0.0
    %205 = vmatpush1.xpose.msra.mxu0 0.0
    %206 = vmatprep.subr.mxu0 0.0
    %207 = vmatpush1.xpose.msra.mxu0 0.0
    %208 = vmatprep.subr.mxu0 0.0
    %209 = vmatpush1.xpose.msra.mxu0 0.0
    %210 = vmatprep.subr.mxu0 0.0
    %211 = vmatpush1.xpose.msra.mxu0 0.0
    %212 = vmatprep.subr.mxu0 0.0
    %213 = vmatpush1.xpose.msra.mxu0 0.0
    %214 = vmatprep.subr.mxu0 0.0
    %215 = vmatpush1.xpose.msra.mxu0 0.0
    %216 = vmatprep.subr.mxu0 0.0
    %217 = vmatpush1.xpose.msra.mxu0 0.0
    %218 = vmatprep.subr.mxu0 0.0
    %219 = vmatpush1.xpose.msra.mxu0 0.0
    %220 = vmatprep.subr.mxu0 0.0
    %221 = vmatpush1.xpose.msra.mxu0 0.0
    %222 = vmatprep.subr.mxu0 0.0
    %223 = vmatpush1.xpose.msra.mxu0 0.0
    %224 = vmatprep.subr.mxu0 0.0
    %225 = vmatpush1.xpose.msra.mxu0 0.0
    %226 = vmatprep.subr.mxu0 0.0
    %227 = vmatpush1.xpose.msra.mxu0 0.0
    %228 = vmatprep.subr.mxu0 0.0
    %229 = vmatpush1.xpose.msra.mxu0 0.0
    %230 = vmatprep.subr.mxu0 0.0
    %231 = vmatpush1.xpose.msra.mxu0 0.0
    %232 = vmatprep.subr.mxu0 0.0
    %233 = vmatpush1.xpose.msra.mxu0 0.0
    %234 = vmatprep.subr.mxu0 0.0
    %235 = vmatpush1.xpose.msra.mxu0 0.0
    %236 = vmatprep.subr.mxu0 0.0
    %237 = vmatpush1.xpose.msra.mxu0 0.0
    %238 = vmatprep.subr.mxu0 0.0
    %239 = vmatpush1.xpose.msra.mxu0 0.0
    %240 = vmatprep.subr.mxu0 0.0
    %241 = vmatpush1.xpose.msra.mxu0 0.0
    %242 = vmatprep.subr.mxu0 0.0
    %243 = vmatpush1.xpose.msra.mxu0 0.0
    %244 = vmatprep.subr.mxu0 0.0
    %245 = vmatpush1.xpose.msra.mxu0 0.0
    %246 = vmatprep.subr.mxu0 0.0
    %247 = vmatpush1.xpose.msra.mxu0 0.0
    %248 = vmatprep.subr.mxu0 0.0
    %249 = vmatpush1.xpose.msra.mxu0 0.0
    %250 = vmatprep.subr.mxu0 0.0
    %251 = vmatpush1.xpose.msra.mxu0 0.0
    %252 = vmatprep.subr.mxu0 0.0
    %253 = vmatpush1.xpose.msra.mxu0 0.0
    %254 = vmatprep.subr.mxu0 0.0
    %255 = vmatpush1.xpose.msra.mxu0 0.0
    %256 = vmatprep.subr.mxu0 0.0
    %257 = vmatpush1.xpose.msra.mxu0 0.0
    %258 = vmatprep.subr.mxu0 0.0
    %259 = vmatpush1.xpose.msra.mxu0 0.0
    %260 = vmatprep.subr.mxu0 0.0
    %261 = vmatpush1.xpose.msra.mxu0 0.0
    %262 = vmatprep.subr.mxu0 0.0
    %263 = vmatpush1.xpose.msra.mxu0 0.0
    %264 = vmatprep.subr.mxu0 0.0
    %265 = vmatpush1.xpose.msra.mxu0 0.0
    %266 = vmatprep.mubr.f32.mxu0 0.0
    %267 = vmatmul.mubr.f32.gmra.mrb[0].mxu0 %v197
    %v268 = vpop.f32.mrb[0].mxu0
    %v269 = vadd.f32 0.0, %v268
    %v270 = vpop.f32.mrb[0].mxu0
    %271 = vdwg.mxu0
    %vm272 = vcmask 57344
    %273 = vst.msk [vmem:[#allocation2] sm:$0x1] %vm272, %v269
    // Predicated region
    $region26: #{tpu_custom_call.1} parent=1 // pred_check
      _
    $region27: #{tpu_custom_call.1} parent=1 // pred_check_branch
      %275 = sbr.rel (0) target = $region29
    $region28: #{tpu_custom_call.1} parent=1 // pred_region
      %s277 = ssub.s32 16, 16
      %278 = vsyncadd [#allocation3], %s277
      %s280 = sshll.u32 [#allocation2], 4
      %s281 = int_to_ptr.vmem [resolvable:$true] %s280
      %283 = dma.vmem_to_hbm [thread:$0]  %s281, 16, %s6, [#allocation3]
    $region29: #{tpu_custom_call.1} parent=1 // pred_fallthru
      _
    // Predicated region
    $region30: #{tpu_custom_call.1} parent=1 // pred_check
      _
    $region31: #{tpu_custom_call.1} parent=1 // pred_check_branch
      %285 = sbr.rel (0) target = $region33
    $region32: #{tpu_custom_call.1} parent=1 // pred_region
      %286 = dma.done [#allocation3], 16
    $region33: #{tpu_custom_call.1} parent=1 // pred_fallthru
      _
    %287 = vsyncpa [#allocation3], 1

</llo_original>
